<compile_context>
chip_gen: v5e
topology: v5e:2x2
jax: 0.10.0
libtpu: 0.0.40
codegen_flags: <defaults>
</compile_context>

<pallas_src>
import functools

import numpy as np
import jax
import jax.numpy as jnp
from jax.experimental import pallas as pl
from jax.experimental.pallas import tpu as pltpu


# ---------------------------------------------------------------------------
# Irreps configuration:  irreps_in = "8x0e + 4x1o + 2x2e"
# ---------------------------------------------------------------------------
MUL_SCALAR = 8                       # 8x0e
NON_SCALARS = [(4, 1), (2, 2)]       # 4x1o + 2x2e
N_GATES = sum(m for m, _ in NON_SCALARS)                 # 6
D_SCALAR = MUL_SCALAR                                    # 8
D_GATED = sum(m * (2 * l + 1) for m, l in NON_SCALARS)   # 22
D_IN = D_SCALAR + D_GATED                                # 30
D_STD = D_SCALAR + N_GATES + D_GATED                     # 36 (standard gate input)
D_OUT = D_SCALAR + D_GATED                               # 30 (= D_IN)

PACK = 4                             # logical rows packed per physical row
D_IN_P = PACK * D_IN                 # 120 (lane-dense, < 128)
D_OUT_P = PACK * D_OUT               # 120

# normalize2mom(tanh) constant: 1 / sqrt(E_{z~N(0,1)}[tanh(z)^2]).
# e3nn estimates this with a 1e6-sample MC draw; we use deterministic
# trapezoidal quadrature (differs from e3nn's constant at ~1e-3 relative).
_xs = np.linspace(-12.0, 12.0, 1_000_001)
_pdf = np.exp(-0.5 * _xs ** 2) / np.sqrt(2.0 * np.pi)
_f = np.tanh(_xs) ** 2 * _pdf
_dx = float(_xs[1] - _xs[0])
_integral = float(np.sum(0.5 * (_f[1:] + _f[:-1])) * _dx)
TANH_CST = float(1.0 / np.sqrt(_integral))


def _round_up(x, m):
    return ((x + m - 1) // m) * m


def build_params(key):
    """Deterministic e3nn-style parameter construction (synthetic weights)."""
    k_ss, k_sg, k1, k2 = jax.random.split(key, 4)
    w_ss = jax.random.normal(k_ss, (MUL_SCALAR, MUL_SCALAR), jnp.float32)
    w_sg = jax.random.normal(k_sg, (MUL_SCALAR, N_GATES), jnp.float32)
    w_l = [jax.random.normal(k, (m, m), jnp.float32)
           for k, (m, _l) in zip([k1, k2], NON_SCALARS)]

    # dense block-structured weight matrix W_full: y = x @ W_full  (D_IN, D_STD)
    w_full = jnp.zeros((D_IN, D_STD), jnp.float32)
    s = 1.0 / np.sqrt(MUL_SCALAR)                      # element norm 1/sqrt(fan_in)
    w_full = w_full.at[:MUL_SCALAR, :MUL_SCALAR].set(w_ss * s)
    w_full = w_full.at[:MUL_SCALAR, MUL_SCALAR:MUL_SCALAR + N_GATES].set(w_sg * s)
    r = D_SCALAR
    c = D_SCALAR + N_GATES
    for w, (m, l) in zip(w_l, NON_SCALARS):
        d = m * (2 * l + 1)
        blk = jnp.kron(w / np.sqrt(m), jnp.eye(2 * l + 1, dtype=jnp.float32))
        w_full = w_full.at[r:r + d, c:c + d].set(blk)
        r += d
        c += d

    # gate-expansion matrix G (N_GATES, D_GATED): G[u, k] = 1 iff flat gated
    # component k belongs to gated channel u.
    g = np.zeros((N_GATES, D_GATED), np.float32)
    u, off = 0, 0
    for m, l in NON_SCALARS:
        for _ in range(m):
            g[u, off:off + 2 * l + 1] = 1.0
            u += 1
            off += 2 * l + 1
    return w_full, jnp.asarray(g)


def build_kernel_params(w_full, gate_expand):
    """Fold + pack the weights for the lane-dense kernel.

    Returns:
      wa   (120,120): act-source weights; per logical row the columns are
                      [scalar columns | gate columns replicated per (2l+1)].
      wl   (120,120): linear-source weights; per logical row the columns are
                      [zeros(8) | gated linear columns].
      mask (1,120)  : 1.0 on scalar lanes, 0.0 on gated lanes (so that
                      out = act * (lin + mask) covers both branches).
    """
    w_act = jnp.concatenate(
        [w_full[:, :D_SCALAR],
         w_full[:, D_SCALAR:D_SCALAR + N_GATES] @ gate_expand],  # exact replication
        axis=1)                                                   # (30, 30)
    w_lin = jnp.concatenate(
        [jnp.zeros((D_IN, D_SCALAR), jnp.float32),
         w_full[:, D_SCALAR + N_GATES:]], axis=1)                 # (30, 30)

    eye = jnp.eye(PACK, dtype=jnp.float32)
    wa = jnp.kron(eye, w_act)                                     # (120, 120)
    wl = jnp.kron(eye, w_lin)                                     # (120, 120)

    lane_mask = jnp.tile(
        jnp.concatenate([jnp.ones((D_SCALAR,), jnp.float32),
                         jnp.zeros((D_GATED,), jnp.float32)]), PACK)
    return wa, wl, lane_mask.reshape(1, D_OUT_P)


# ---------------------------------------------------------------------------
# Pallas kernel: linear (MXU) + gate (tanh + scalar gating), lane-packed.
# ---------------------------------------------------------------------------
def _gate_kernel(x_ref, wa_ref, wl_ref, m_ref, o_ref, *, tanh_cst):
    x = x_ref[...].astype(jnp.float32)                            # (TN, 120)
    # Activation source: [scalar pre-acts | gate pre-acts broadcast per lane].
    act = tanh_cst * jnp.tanh(
        jnp.dot(x, wa_ref[...], preferred_element_type=jnp.float32))
    # Linear source: zeros on scalar lanes, gated linear outputs elsewhere.
    lin = jnp.dot(x, wl_ref[...], preferred_element_type=jnp.float32)
    # Scalar lanes: act * 1 ; gated lanes: act(gate) * lin.  Single dense store.
    o_ref[...] = (act * (lin + m_ref[...])).astype(o_ref.dtype)


def learnable_gate_forward(x, wa, wl, lane_mask, *, tile_rows=4096):
    """x: (..., D_IN) -> (..., D_OUT). Runs in a single fused Pallas kernel."""
    lead = x.shape[:-1]
    xf = x.reshape(-1, D_IN)
    n = xf.shape[0]

    # Pack PACK logical rows per physical row (zero-copy when n % PACK == 0).
    if n % PACK != 0:
        # Rare/odd shapes only; pad generously so blocks stay sublane-aligned.
        pad = _round_up(n, PACK * 8) - n
        xf = jnp.pad(xf, ((0, pad), (0, 0)))
    n_pad = xf.shape[0]
    xp = xf.reshape(n_pad // PACK, D_IN_P)
    rows = xp.shape[0]

    sub = 8 if xp.dtype.itemsize >= 4 else 16          # sublane multiple
    tile = max(sub, (min(tile_rows, rows) // sub) * sub)
    # v7x megacore: keep >= 2 grid steps for large inputs so both TensorCores
    # (grid axis is "parallel") get a share of the work.
    if rows >= 1024:
        tile = min(tile, _round_up(pl.cdiv(rows, 2), sub))
    grid = pl.cdiv(rows, tile)                          # partial last block OK

    out = pl.pallas_call(
        functools.partial(_gate_kernel, tanh_cst=TANH_CST),
        out_shape=jax.ShapeDtypeStruct((rows, D_OUT_P), x.dtype),
        grid_spec=pltpu.PrefetchScalarGridSpec(
            num_scalar_prefetch=0,
            grid=(grid,),
            in_specs=[
                pl.BlockSpec((tile, D_IN_P), lambda i: (i, 0)),
                # Small weights / mask: untiled, VMEM-resident (fetched once,
                # not double-buffered each grid step).
                pl.BlockSpec(memory_space=pltpu.MemorySpace.VMEM),
                pl.BlockSpec(memory_space=pltpu.MemorySpace.VMEM),
                pl.BlockSpec(memory_space=pltpu.MemorySpace.VMEM),
            ],
            out_specs=pl.BlockSpec((tile, D_OUT_P), lambda i: (i, 0)),
        ),
        compiler_params=pltpu.CompilerParams(
            dimension_semantics=("parallel",),
            vmem_limit_bytes=32 * 1024 * 1024),
    )(xp, wa, wl, lane_mask)

    out = out.reshape(n_pad, D_OUT)
    if n_pad != n:
        out = out[:n]
    return out.reshape(*lead, D_OUT)


def reference_forward(x, w_full, gate_expand):
    """Plain-JAX reference with identical math (for verification)."""
    y = x.reshape(-1, D_IN) @ w_full
    scalars = y[:, :D_SCALAR]
    gates = y[:, D_SCALAR:D_SCALAR + N_GATES]
    gated = y[:, D_SCALAR + N_GATES:]
    act_s = TANH_CST * jnp.tanh(scalars)
    act_g = TANH_CST * jnp.tanh(gates)
    out = jnp.concatenate([act_s, gated * (act_g @ gate_expand)], axis=-1)
    return out.reshape(*x.shape[:-1], D_OUT)


if __name__ == "__main__":
    key = jax.random.PRNGKey(0)
    k_x, k_x2, k_w = jax.random.split(key, 3)

    w_full, gate_expand = build_params(k_w)
    wa, wl, lane_mask = build_kernel_params(w_full, gate_expand)

    # small deterministic input: batch=2, nodes=32, irreps dim=30 last
    x = jax.random.normal(k_x, (2, 32, D_IN), dtype=jnp.float32)
    out = jax.block_until_ready(learnable_gate_forward(x, wa, wl, lane_mask))
    ref = jax.block_until_ready(reference_forward(x, w_full, gate_expand))
    assert out.shape == (2, 32, D_OUT)
    np.testing.assert_allclose(np.asarray(out), np.asarray(ref), rtol=1e-4, atol=1e-4)

    # row count not a multiple of PACK exercises the padding / remainder path
    x2 = jax.random.normal(k_x2, (2, 37, D_IN), dtype=jnp.float32)
    out2 = jax.block_until_ready(learnable_gate_forward(x2, wa, wl, lane_mask))
    ref2 = jax.block_until_ready(reference_forward(x2, w_full, gate_expand))
    assert out2.shape == (2, 37, D_OUT)
    np.testing.assert_allclose(np.asarray(out2), np.asarray(ref2), rtol=1e-4, atol=1e-4)

    print("KERNEL_OK")
</pallas_src>

<mosaic_0001>
module attributes {stable_mosaic.version = 11 : i64} {
  func.func @_gate_kernel(%arg0: i32, %arg1: memref<16x120xf32, #tpu.memory_space<vmem>>, %arg2: memref<120x120xf32, #tpu.memory_space<vmem>>, %arg3: memref<120x120xf32, #tpu.memory_space<vmem>>, %arg4: memref<1x120xf32, #tpu.memory_space<vmem>>, %arg5: memref<16x120xf32, #tpu.memory_space<vmem>>) attributes {dimension_semantics = [#tpu.dimension_semantics<parallel>], iteration_bounds = array<i64: 1>, scalar_prefetch = 0 : i64, scratch_operands = 0 : i64, tpu.core_type = #tpu.core_type<tc>, window_params = [{transform_indices = @transform_0, window_bounds = array<i64: 16, 120>}, {pipeline_mode = #tpu.pipeline_mode<synchronous>, transform_indices = @transform_1, window_bounds = array<i64: 120, 120>}, {pipeline_mode = #tpu.pipeline_mode<synchronous>, transform_indices = @transform_2, window_bounds = array<i64: 120, 120>}, {pipeline_mode = #tpu.pipeline_mode<synchronous>, transform_indices = @transform_3, window_bounds = array<i64: 1, 120>}, {transform_indices = @transform_4, window_bounds = array<i64: 16, 120>}]} {
    %c0 = arith.constant 0 : index
    %c0_0 = arith.constant 0 : index
    %0 = vector.load %arg1[%c0, %c0_0] : memref<16x120xf32, #tpu.memory_space<vmem>>, vector<16x120xf32>
    %c0_1 = arith.constant 0 : index
    %c0_2 = arith.constant 0 : index
    %1 = vector.load %arg2[%c0_1, %c0_2] : memref<120x120xf32, #tpu.memory_space<vmem>>, vector<120x120xf32>
    %cst = arith.constant dense<0.000000e+00> : vector<16x120xf32>
    %2 = tpu.matmul %0, %1, %cst {dimension_numbers = #tpu.dot_dimension_numbers<[1], [0], [0], [1], [0, 0, 1, 1], [], []>} : vector<16x120xf32>, vector<120x120xf32>, vector<16x120xf32> -> vector<16x120xf32>
    %3 = math.tanh %2 : vector<16x120xf32>
    %cst_3 = arith.constant 1.5925374 : f32
    %4 = vector.broadcast %cst_3 : f32 to vector<16x120xf32>
    %5 = arith.mulf %4, %3 : vector<16x120xf32>
    %c0_4 = arith.constant 0 : index
    %c0_5 = arith.constant 0 : index
    %6 = vector.load %arg3[%c0_4, %c0_5] : memref<120x120xf32, #tpu.memory_space<vmem>>, vector<120x120xf32>
    %cst_6 = arith.constant dense<0.000000e+00> : vector<16x120xf32>
    %7 = tpu.matmul %0, %6, %cst_6 {dimension_numbers = #tpu.dot_dimension_numbers<[1], [0], [0], [1], [0, 0, 1, 1], [], []>} : vector<16x120xf32>, vector<120x120xf32>, vector<16x120xf32> -> vector<16x120xf32>
    %c0_7 = arith.constant 0 : index
    %c0_8 = arith.constant 0 : index
    %8 = vector.load %arg4[%c0_7, %c0_8] : memref<1x120xf32, #tpu.memory_space<vmem>>, vector<1x120xf32>
    %9 = vector.broadcast %8 : vector<1x120xf32> to vector<16x120xf32>
    %10 = arith.addf %7, %9 : vector<16x120xf32>
    %11 = arith.mulf %5, %10 : vector<16x120xf32>
    %c0_9 = arith.constant 0 : index
    %c0_10 = arith.constant 0 : index
    %12 = vector.load %arg5[%c0_9, %c0_10] : memref<16x120xf32, #tpu.memory_space<vmem>>, vector<16x120xf32>
    tpu.vector_store %arg5[%c0_9, %c0_10], %11 {strides = array<i32>} : memref<16x120xf32, #tpu.memory_space<vmem>>, vector<16x120xf32>,
    return
  }
  func.func @transform_0(%arg0: i32) -> (i32, i32) {
    %c0_i32 = arith.constant 0 : i32
    %c0_i32_0 = arith.constant 0 : i32
    return %arg0, %c0_i32 : i32, i32
  }
  func.func @transform_1(%arg0: i32) -> (i32, i32) {
    %c0_i32 = arith.constant 0 : i32
    %c0_i32_0 = arith.constant 0 : i32
    %c0_i32_1 = arith.constant 0 : i32
    return %c0_i32, %c0_i32_0 : i32, i32
  }
  func.func @transform_2(%arg0: i32) -> (i32, i32) {
    %c0_i32 = arith.constant 0 : i32
    %c0_i32_0 = arith.constant 0 : i32
    %c0_i32_1 = arith.constant 0 : i32
    return %c0_i32, %c0_i32_0 : i32, i32
  }
  func.func @transform_3(%arg0: i32) -> (i32, i32) {
    %c0_i32 = arith.constant 0 : i32
    %c0_i32_0 = arith.constant 0 : i32
    %c0_i32_1 = arith.constant 0 : i32
    return %c0_i32, %c0_i32_0 : i32, i32
  }
  func.func @transform_4(%arg0: i32) -> (i32, i32) {
    %c0_i32 = arith.constant 0 : i32
    %c0_i32_0 = arith.constant 0 : i32
    return %arg0, %c0_i32 : i32, i32
  }
}

</mosaic_0001>

<llo_original>
// kernel: tpu_custom_call.1
$region0: #{tpu_custom_call.1}
  #allocation0 [shape = 'u32[]', space=smem, size = 0x4, offset = 0x4, fixed_abs, tag = 'smem constant byte address 0x4 - core index']
  #allocation1 [shape = 'u32[72,128]{1,0:T(1,128)}', space=vmem, size = 0x9000, scoped, tag = 'internal scratch']
  %s0 = inlined_call_operand.hbm [shape: f32[16,120], index: 0, kind: input, shape index: {}]
  %s1 = inlined_call_operand.hbm [shape: f32[120,120], index: 1, kind: input, shape index: {}]
  %s2 = inlined_call_operand.hbm [shape: f32[120,120], index: 2, kind: input, shape index: {}]
  %s3 = inlined_call_operand.vmem [shape: f32[1,120], index: 3, kind: input, shape index: {}]
  %s4 = inlined_call_operand.hbm [shape: f32[16,120], index: 4, kind: output, shape index: {}]
  %s5 = sld [smem:[#allocation0]]
  $region38: #{tpu_custom_call.1} parent=0
    _
  %s7 = ssub.s32 1, %s5
  %s8 = scalar_select 0, %s7, %s5
  $region1: #{tpu_custom_call.1} parent=0
    #allocation2 [shape = 'u8[8192]{0}', space=vmem, size = 0x2000, scoped, tag = 'input window, operand 0, single buffered']
    #allocation3 [shape = 's32[1]{0}', space=sflag, size = 0x4, scoped, tag = 'scoped memory for tpu_custom_call.1']
    #allocation4 [shape = 's32[1]{0}', space=sflag, size = 0x4, scoped, tag = 'scoped memory for tpu_custom_call.1']
    #allocation5 [shape = 'u8[61440]{0}', space=vmem, size = 0xf000, scoped, tag = 'input window, operand 1, single buffered']
    #allocation6 [shape = 's32[1]{0}', space=sflag, size = 0x4, scoped, tag = 'scoped memory for tpu_custom_call.1']
    #allocation7 [shape = 'u8[61440]{0}', space=vmem, size = 0xf000, scoped, tag = 'input window, operand 2, single buffered']
    #allocation8 [shape = 'u8[8192]{0}', space=vmem, size = 0x2000, scoped, tag = 'output window, operand 0, single buffered']
    %9 = vsyncpa [#allocation3], 0
    %10 = vsyncpa [#allocation6], 0
    %11 = vsyncpa [#allocation4], 0
    // Predicated region
    $region2: #{tpu_custom_call.1} parent=1 // pred_check
      _
    $region3: #{tpu_custom_call.1} parent=1 // pred_check_branch
      %13 = sbr.rel (0) target = $region5
    $region4: #{tpu_custom_call.1} parent=1 // pred_region
      %15 = vsyncadd [#allocation3], 0
      %s16 = sshll.u32 %s0, 4
      %s17 = int_to_ptr.hbm [resolvable:$true] %s16
      %s18 = sshll.u32 [#allocation2], 4
      %s19 = int_to_ptr.vmem [resolvable:$true] %s18
      %24 = dma.hbm_to_vmem [thread:$0]  %s17, 256, %s19, [#allocation3], 128, 128, 8
    $region5: #{tpu_custom_call.1} parent=1 // pred_fallthru
      _
    // Predicated region
    $region6: #{tpu_custom_call.1} parent=1 // pred_check
      _
    $region7: #{tpu_custom_call.1} parent=1 // pred_check_branch
      %26 = sbr.rel (0) target = $region9
    $region8: #{tpu_custom_call.1} parent=1 // pred_region
      %28 = vsyncadd [#allocation6], 0
      %s29 = sshll.u32 %s1, 4
      %s30 = int_to_ptr.hbm [resolvable:$true] %s29
      %s31 = sshll.u32 [#allocation5], 4
      %s32 = int_to_ptr.vmem [resolvable:$true] %s31
      %37 = dma.hbm_to_vmem [thread:$0]  %s30, 1920, %s32, [#allocation6], 128, 128, 8
    $region9: #{tpu_custom_call.1} parent=1 // pred_fallthru
      _
    // Predicated region
    $region10: #{tpu_custom_call.1} parent=1 // pred_check
      _
    $region11: #{tpu_custom_call.1} parent=1 // pred_check_branch
      %39 = sbr.rel (0) target = $region13
    $region12: #{tpu_custom_call.1} parent=1 // pred_region
      %41 = vsyncadd [#allocation6], 0
      %s42 = sshll.u32 %s2, 4
      %s43 = int_to_ptr.hbm [resolvable:$true] %s42
      %s44 = sshll.u32 [#allocation7], 4
      %s45 = int_to_ptr.vmem [resolvable:$true] %s44
      %50 = dma.hbm_to_vmem [thread:$0]  %s43, 1920, %s45, [#allocation6], 128, 128, 8
    $region13: #{tpu_custom_call.1} parent=1 // pred_fallthru
      _
    // Predicated region
    $region14: #{tpu_custom_call.1} parent=1 // pred_check
      _
    $region15: #{tpu_custom_call.1} parent=1 // pred_check_branch
      %52 = sbr.rel (0) target = $region17
    $region16: #{tpu_custom_call.1} parent=1 // pred_region
      _
    $region17: #{tpu_custom_call.1} parent=1 // pred_fallthru
      _
    // Predicated region
    $region18: #{tpu_custom_call.1} parent=1 // pred_check
      _
    $region19: #{tpu_custom_call.1} parent=1 // pred_check_branch
      %54 = sbr.rel (0) target = $region21
    $region20: #{tpu_custom_call.1} parent=1 // pred_region
      %56 = dma.done [#allocation3], 256
    $region21: #{tpu_custom_call.1} parent=1 // pred_fallthru
      _
    // Predicated region
    $region22: #{tpu_custom_call.1} parent=1 // pred_check
      _
    $region23: #{tpu_custom_call.1} parent=1 // pred_check_branch
      %58 = sbr.rel (0) target = $region25
    $region24: #{tpu_custom_call.1} parent=1 // pred_region
      %60 = dma.done [#allocation6], 1920
    $region25: #{tpu_custom_call.1} parent=1 // pred_fallthru
      _
    // Predicated region
    $region26: #{tpu_custom_call.1} parent=1 // pred_check
      _
    $region27: #{tpu_custom_call.1} parent=1 // pred_check_branch
      %62 = sbr.rel (0) target = $region29
    $region28: #{tpu_custom_call.1} parent=1 // pred_region
      %64 = dma.done [#allocation6], 1920
    $region29: #{tpu_custom_call.1} parent=1 // pred_fallthru
      _
    %v65 = vld [vmem:[#allocation2] sm:$0xff]
    %v66 = vld [vmem:[#allocation2 + $0x8] sm:$0xff]
    %v67 = vld [vmem:[#allocation5] sm:$0xff]
    %v68 = vld [vmem:[#allocation5 + $0x8] sm:$0xff]
    %v69 = vld [vmem:[#allocation5 + $0x10] sm:$0xff]
    %v70 = vld [vmem:[#allocation5 + $0x18] sm:$0xff]
    %v71 = vld [vmem:[#allocation5 + $0x20] sm:$0xff]
    %v72 = vld [vmem:[#allocation5 + $0x28] sm:$0xff]
    %v73 = vld [vmem:[#allocation5 + $0x30] sm:$0xff]
    %v74 = vld [vmem:[#allocation5 + $0x38] sm:$0xff]
    %v75 = vld [vmem:[#allocation5 + $0x40] sm:$0xff]
    %v76 = vld [vmem:[#allocation5 + $0x48] sm:$0xff]
    %v77 = vld [vmem:[#allocation5 + $0x50] sm:$0xff]
    %v78 = vld [vmem:[#allocation5 + $0x58] sm:$0xff]
    %v79 = vld [vmem:[#allocation5 + $0x60] sm:$0xff]
    %v80 = vld [vmem:[#allocation5 + $0x68] sm:$0xff]
    %v81 = vld [vmem:[#allocation5 + $0x70] sm:$0xff]
    %vm82 = vcmask 982016
    %v84 = vsel %vm82, %v65, 0
    %v87 = vsel %vm82, %v66, 0
    %89 = vmatpush.msra.mxu0 0.0
    %90 = vmatpush.msra.mxu0 %v81
    %91 = vmatpush.msra.mxu0 %v80
    %92 = vmatpush.msra.mxu0 %v79
    %93 = vmatpush.msra.mxu0 %v78
    %94 = vmatpush.msra.mxu0 %v77
    %95 = vmatpush.msra.mxu0 %v76
    %96 = vmatpush.msra.mxu0 %v75
    %97 = vmatpush.msra.mxu0 %v74
    %98 = vmatpush.msra.mxu0 %v73
    %99 = vmatpush.msra.mxu0 %v72
    %100 = vmatpush.msra.mxu0 %v71
    %101 = vmatpush.msra.mxu0 %v70
    %102 = vmatpush.msra.mxu0 %v69
    %103 = vmatpush.msra.mxu0 %v68
    %104 = vmatpush.msra.mxu0 %v67
    %105 = vmatmul.f32.gmra.mxu0 %v84
    %v106 = vpop.f32.mrf.mxu0
    %v107 = vadd.f32 0.0, %v106
    %108 = vmatmul.f32.gmra.mxu0 %v87
    %v109 = vpop.f32.mrf.mxu0
    %v110 = vadd.f32 0.0, %v109
    %111 = vdwg.mxu0
    %v112 = vtanh.pop %v107
    %v113 = vtanh.pop %v110
    %v114 = vmul.f32 %v112, 1.5925374
    %v115 = vmul.f32 %v113, 1.5925374
    %v116 = vld [vmem:[#allocation7] sm:$0xff]
    %v117 = vld [vmem:[#allocation7 + $0x8] sm:$0xff]
    %v118 = vld [vmem:[#allocation7 + $0x10] sm:$0xff]
    %v119 = vld [vmem:[#allocation7 + $0x18] sm:$0xff]
    %v120 = vld [vmem:[#allocation7 + $0x20] sm:$0xff]
    %v121 = vld [vmem:[#allocation7 + $0x28] sm:$0xff]
    %v122 = vld [vmem:[#allocation7 + $0x30] sm:$0xff]
    %v123 = vld [vmem:[#allocation7 + $0x38] sm:$0xff]
    %v124 = vld [vmem:[#allocation7 + $0x40] sm:$0xff]
    %v125 = vld [vmem:[#allocation7 + $0x48] sm:$0xff]
    %v126 = vld [vmem:[#allocation7 + $0x50] sm:$0xff]
    %v127 = vld [vmem:[#allocation7 + $0x58] sm:$0xff]
    %v128 = vld [vmem:[#allocation7 + $0x60] sm:$0xff]
    %v129 = vld [vmem:[#allocation7 + $0x68] sm:$0xff]
    %v130 = vld [vmem:[#allocation7 + $0x70] sm:$0xff]
    %v131 = vld [vmem:[%s3] sm:$0x1]
    %v133 = vperm.slane %v131, 0
    %135 = vmatpush.msra.mxu0 0.0
    %136 = vmatpush.msra.mxu0 %v130
    %137 = vmatpush.msra.mxu0 %v129
    %138 = vmatpush.msra.mxu0 %v128
    %139 = vmatpush.msra.mxu0 %v127
    %140 = vmatpush.msra.mxu0 %v126
    %141 = vmatpush.msra.mxu0 %v125
    %142 = vmatpush.msra.mxu0 %v124
    %143 = vmatpush.msra.mxu0 %v123
    %144 = vmatpush.msra.mxu0 %v122
    %145 = vmatpush.msra.mxu0 %v121
    %146 = vmatpush.msra.mxu0 %v120
    %147 = vmatpush.msra.mxu0 %v119
    %148 = vmatpush.msra.mxu0 %v118
    %149 = vmatpush.msra.mxu0 %v117
    %150 = vmatpush.msra.mxu0 %v116
    %151 = vmatmul.f32.gmra.mxu0 %v84
    %v152 = vpop.f32.mrf.mxu0
    %v153 = vadd.f32 %v133, %v152
    %154 = vmatmul.f32.gmra.mxu0 %v87
    %v155 = vpop.f32.mrf.mxu0
    %v156 = vadd.f32 %v133, %v155
    %157 = vdwg.mxu0
    %v158 = vmul.f32 %v114, %v153
    %v159 = vmul.f32 %v115, %v156
    %160 = vst.msk [vmem:[#allocation8] sm:$0xff] %vm82, %v158
    %161 = vst.msk [vmem:[#allocation8 + $0x8] sm:$0xff] %vm82, %v159
    // Predicated region
    $region30: #{tpu_custom_call.1} parent=1 // pred_check
      _
    $region31: #{tpu_custom_call.1} parent=1 // pred_check_branch
      %163 = sbr.rel (0) target = $region33
    $region32: #{tpu_custom_call.1} parent=1 // pred_region
      %165 = vsyncadd [#allocation4], 0
      %s166 = sshll.u32 [#allocation8], 4
      %s167 = int_to_ptr.vmem [resolvable:$true] %s166
      %s168 = sshll.u32 %s4, 4
      %s169 = int_to_ptr.hbm [resolvable:$true] %s168
      %174 = dma.vmem_to_hbm [thread:$0]  %s167, 256, %s169, [#allocation4], 128, 128, 8
    $region33: #{tpu_custom_call.1} parent=1 // pred_fallthru
      _
    // Predicated region
    $region34: #{tpu_custom_call.1} parent=1 // pred_check
      _
    $region35: #{tpu_custom_call.1} parent=1 // pred_check_branch
      %176 = sbr.rel (0) target = $region37
    $region36: #{tpu_custom_call.1} parent=1 // pred_region
      %178 = dma.done [#allocation4], 256
    $region37: #{tpu_custom_call.1} parent=1 // pred_fallthru
      _
    %179 = vsyncpa [#allocation3], 1
    %180 = vsyncpa [#allocation6], 1
    %181 = vsyncpa [#allocation4], 1

</llo_original>
